<compile_context>
chip_gen: v5e
topology: v5e:2x2
jax: 0.10.0
libtpu: 0.0.40
codegen_flags: <defaults>
</compile_context>

<pallas_src>
import functools
import math

import jax
import jax.numpy as jnp
from jax.experimental import pallas as pl
from jax.experimental.pallas import tpu as pltpu


# ----------------------------------------------------------------------------
# small helpers
# ----------------------------------------------------------------------------
def _gelu_exact(x):
    # matches torch.nn.GELU() default (erf formulation)
    return 0.5 * x * (1.0 + jax.lax.erf(x * (1.0 / math.sqrt(2.0))))


def _layernorm(x, g, b, eps=1e-5):
    mu = jnp.mean(x, axis=-1, keepdims=True)
    xc = x - mu
    var = jnp.mean(xc * xc, axis=-1, keepdims=True)
    return xc * jax.lax.rsqrt(var + eps) * g + b


def _tpu_vmem_and_cores():
    """Best-effort (VMEM bytes per core, TensorCores per chip) query."""
    vmem_cap = 128 << 20
    cores = 1
    try:
        info = pltpu.get_tpu_info()
        vmem_cap = int(getattr(info, "vmem_capacity_bytes", vmem_cap) or vmem_cap)
        for name in ("num_cores", "core_count", "num_tensorcores",
                     "tensorcore_count"):
            val = getattr(info, name, None)
            if val:
                cores = int(val)
                break
    except Exception:
        pass
    if cores == 1 and vmem_cap <= (64 << 20):
        cores = 2            # v7x: 64 MiB per TensorCore, 2 TensorCores / chip
    return vmem_cap, cores


def _pick_batch_block(batch, cores, fits):
    """Largest divisor of `batch` that fits the VMEM budget.  On multi-TC chips
    (v7x) prefer a split giving every TensorCore at least one 'parallel' grid
    step; on single-TC chips (v5e/v6e) a single big step avoids the ~0.35 us
    per-step pipeline overhead.  Prime/awkward batches fall back gracefully."""
    divisors = [d for d in range(1, batch + 1) if batch % d == 0]
    fitting = [d for d in divisors if fits(d)] or [1]
    bt = max(fitting)
    if cores >= 2:
        multi = [d for d in fitting if batch // d >= cores]
        if multi:
            bt = max(multi)
    return bt


def _pick_row_block(batch, cores):
    """Row-block for 2-D (rows, feat) kernels: keep the second-minor block dim
    either equal to the full batch or 8-aligned (sublane tile)."""
    divisors = [d for d in range(1, batch + 1)
                if batch % d == 0 and (d == batch or d % 8 == 0)]
    bt = batch
    if cores >= 2:
        multi = [d for d in divisors if batch // d >= cores]
        if multi:
            bt = max(multi)
    return bt


# ----------------------------------------------------------------------------
# Fused embedding kernel: folded (patch -> 2048 -> dim) image embed (+ pos) and
# fasttext -> dim text embed in one launch, bf16 outputs.
# ----------------------------------------------------------------------------
def _embed_kernel(patch_ref, txt_ref, w_img_ref, b_img_ref, pos_img_ref,
                  w_txt_ref, b_txt_ref, oi_ref, ot_ref):
    bt, n_img, cpp = patch_ref.shape
    T, ft = txt_ref.shape[1], txt_ref.shape[2]
    D = w_img_ref.shape[1]

    img = jnp.dot(patch_ref[...].astype(jnp.bfloat16).reshape(bt * n_img, cpp),
                  w_img_ref[...], preferred_element_type=jnp.float32)
    img = img + b_img_ref[...]
    img = img.reshape(bt, n_img, D) + pos_img_ref[...]          # + pos[1:65]
    oi_ref[...] = img.astype(oi_ref.dtype)

    txt = jnp.dot(txt_ref[...].astype(jnp.bfloat16).reshape(bt * T, ft),
                  w_txt_ref[...], preferred_element_type=jnp.float32)
    txt = txt + b_txt_ref[...]
    ot_ref[...] = txt.reshape(bt, T, D).astype(ot_ref.dtype)


def embed_tokens(patches, txt, params, bt):
    B, n_img, cpp = patches.shape
    _, T, ft = txt.shape
    D = params["w_img"].shape[1]

    def rep(arr):
        n = arr.ndim
        return pl.BlockSpec(arr.shape, lambda b, _n=n: (0,) * _n)

    img_emb, txt_emb = pl.pallas_call(
        _embed_kernel,
        out_shape=(jax.ShapeDtypeStruct((B, n_img, D), jnp.bfloat16),
                   jax.ShapeDtypeStruct((B, T, D), jnp.bfloat16)),
        grid_spec=pltpu.PrefetchScalarGridSpec(
            num_scalar_prefetch=0,
            grid=(B // bt,),
            in_specs=[pl.BlockSpec((bt, n_img, cpp), lambda b: (b, 0, 0)),
                      pl.BlockSpec((bt, T, ft), lambda b: (b, 0, 0)),
                      rep(params["w_img"]), rep(params["b_img"]),
                      rep(params["pos_img"]),
                      rep(params["w_txt"]), rep(params["b_txt"])],
            out_specs=[pl.BlockSpec((bt, n_img, D), lambda b: (b, 0, 0)),
                       pl.BlockSpec((bt, T, D), lambda b: (b, 0, 0))],
        ),
        compiler_params=pltpu.CompilerParams(
            dimension_semantics=("parallel",)),
    )(patches, txt, params["w_img"], params["b_img"], params["pos_img"],
      params["w_txt"], params["b_txt"])

    cls = jnp.broadcast_to(params["cls_pos"].astype(jnp.bfloat16), (B, 1, D))
    # TODO(synk): the tiny cls/img/txt sequence concat is left to XLA glue.
    return jnp.concatenate([cls, img_emb, txt_emb], axis=1)      # (B, S, D) bf16


# ----------------------------------------------------------------------------
# One nn.TransformerEncoderLayer (batch_first, post-LN, ReLU FFN, eval mode)
# fused into a single kernel; grid iterates over blocks of `bt` batch elements.
# ----------------------------------------------------------------------------
def _encoder_layer_kernel(x_ref, wqkv_ref, bqkv_ref, wo_ref, bo_ref,
                          ln1_g_ref, ln1_b_ref, w1_ref, b1_ref,
                          w2_ref, b2_ref, ln2_g_ref, ln2_b_ref,
                          o_ref, *, heads):
    bt, S, D = x_ref.shape
    hd = D // heads
    R = bt * S

    x_bf = x_ref[...].reshape(R, D)                  # bf16 rows
    x32 = x_bf.astype(jnp.float32)

    # ---- fused QKV projection: ONE lane-dense (R, D) @ (D, 3D) MXU matmul.
    # 1/sqrt(hd) is folded into the Q columns of wqkv/bqkv offline.
    qkv = jnp.dot(x_bf, wqkv_ref[...], preferred_element_type=jnp.float32)
    qkv = qkv + bqkv_ref[...]                        # (R, 3D) f32

    # ---- per-head attention (static loop), f32 softmax, EUP reciprocal.
    head_outs = []
    for h in range(heads):
        q = qkv[:, h * hd:(h + 1) * hd]
        k = qkv[:, D + h * hd:D + (h + 1) * hd]
        v = qkv[:, 2 * D + h * hd:2 * D + (h + 1) * hd]
        q = q.astype(jnp.bfloat16).reshape(bt, S, hd)
        k = k.astype(jnp.bfloat16).reshape(bt, S, hd)
        v = v.astype(jnp.bfloat16).reshape(bt, S, hd)

        s = jnp.einsum('bqe,bke->bqk', q, k,
                       preferred_element_type=jnp.float32)       # (bt, S, S)
        s = s - jnp.max(s, axis=-1, keepdims=True)
        p = jnp.exp(s)
        p = p * pl.reciprocal(jnp.sum(p, axis=-1, keepdims=True), approx=True)
        oh = jnp.einsum('bqk,bke->bqe', p.astype(jnp.bfloat16), v,
                        preferred_element_type=jnp.float32)      # (bt, S, hd)
        head_outs.append(oh.reshape(R, hd))

    # ---- concat heads along lanes, single (R, D) @ (D, D) out-projection.
    o_heads = jnp.concatenate(head_outs, axis=-1).astype(jnp.bfloat16)
    attn = jnp.dot(o_heads, wo_ref[...],
                   preferred_element_type=jnp.float32) + bo_ref[...]

    # ---- post-LN residual block 1
    h1 = _layernorm(x32 + attn, ln1_g_ref[...], ln1_b_ref[...])

    # ---- FFN (ReLU, PyTorch default) + post-LN residual block 2
    ff = jnp.dot(h1.astype(jnp.bfloat16), w1_ref[...],
                 preferred_element_type=jnp.float32) + b1_ref[...]
    ff = jnp.maximum(ff, 0.0)
    ff = jnp.dot(ff.astype(jnp.bfloat16), w2_ref[...],
                 preferred_element_type=jnp.float32) + b2_ref[...]
    out = _layernorm(h1 + ff, ln2_g_ref[...], ln2_b_ref[...])

    o_ref[...] = out.reshape(bt, S, D).astype(o_ref.dtype)


def _encoder_vmem_bytes(bt, S, D, mlp_dim):
    """Rough VMEM footprint for one encoder grid step (inputs double-buffered,
    replicated weights double-buffered, dominant f32 temporaries)."""
    f32, bf16 = 4, 2
    rows = bt * S
    io = 2 * 2 * rows * D * bf16
    weights = 2 * ((3 * D * D + D * D + 2 * D * mlp_dim) * bf16
                   + (3 * D + 6 * D + mlp_dim) * f32)
    tmp = rows * (3 * D + 3 * D + mlp_dim) * f32 + 3 * bt * S * S * f32
    return io + weights + tmp


def encoder_layer(x, lp, heads, bt, vmem_limit):
    B, S, D = x.shape
    assert B % bt == 0 and D % heads == 0
    kernel = functools.partial(_encoder_layer_kernel, heads=heads)

    def rep(arr):
        n = arr.ndim
        return pl.BlockSpec(arr.shape, lambda b, _n=n: (0,) * _n)

    weights = (lp["wqkv"], lp["bqkv"], lp["wo"], lp["bo"],
               lp["ln1_g"], lp["ln1_b"], lp["w1"], lp["b1"],
               lp["w2"], lp["b2"], lp["ln2_g"], lp["ln2_b"])

    return pl.pallas_call(
        kernel,
        out_shape=jax.ShapeDtypeStruct((B, S, D), jnp.bfloat16),
        grid_spec=pltpu.PrefetchScalarGridSpec(
            num_scalar_prefetch=0,
            grid=(B // bt,),
            in_specs=[pl.BlockSpec((bt, S, D), lambda b: (b, 0, 0))]
                     + [rep(w) for w in weights],
            out_specs=pl.BlockSpec((bt, S, D), lambda b: (b, 0, 0)),
        ),
        compiler_params=pltpu.CompilerParams(
            dimension_semantics=("parallel",),
            vmem_limit_bytes=vmem_limit),
    )(x, *weights)


# ----------------------------------------------------------------------------
# Classifier head: Linear -> GELU -> Linear fused into one tiny kernel.
# ----------------------------------------------------------------------------
def _mlp_head_kernel(x_ref, w1_ref, b1_ref, w2_ref, b2_ref, o_ref):
    h = jnp.dot(x_ref[...].astype(jnp.bfloat16), w1_ref[...],
                preferred_element_type=jnp.float32) + b1_ref[...]
    h = _gelu_exact(h)
    o_ref[...] = (jnp.dot(h.astype(jnp.bfloat16), w2_ref[...],
                          preferred_element_type=jnp.float32)
                  + b2_ref[...]).astype(o_ref.dtype)


def mlp_head(x, w1, b1, w2, b2, bt):
    B, D = x.shape
    N = w2.shape[1]

    def rep(arr):
        n = arr.ndim
        return pl.BlockSpec(arr.shape, lambda i, _n=n: (0,) * _n)

    return pl.pallas_call(
        _mlp_head_kernel,
        out_shape=jax.ShapeDtypeStruct((B, N), jnp.float32),
        grid_spec=pltpu.PrefetchScalarGridSpec(
            num_scalar_prefetch=0,
            grid=(B // bt,),
            in_specs=[pl.BlockSpec((bt, D), lambda i: (i, 0)),
                      rep(w1), rep(b1), rep(w2), rep(b2)],
            out_specs=pl.BlockSpec((bt, N), lambda i: (i, 0)),
        ),
        compiler_params=pltpu.CompilerParams(
            dimension_semantics=("parallel",)),
    )(x, w1, b1, w2, b2)


# ----------------------------------------------------------------------------
# Parameters (deterministic, synthetic) + inference-ready preparation.
# ----------------------------------------------------------------------------
def init_params(key, *, dim, depth, mlp_dim, num_classes, channels=3,
                patch=4, dim_cnn=2048, dim_txt=300, num_cnn_features=64):
    ks = jax.random.split(key, 8 + depth)

    def nrm(k, shape, std=0.02):
        return (std * jax.random.normal(k, shape)).astype(jnp.float32)

    params = {
        "patch": patch,
        # stand-in frozen backbone: stride-P patch conv -> 2048 features
        "w_patch": nrm(ks[0], (channels * patch * patch, dim_cnn)),
        "b_patch": jnp.zeros((1, dim_cnn), jnp.float32),
        "w_cnn": nrm(ks[1], (dim_cnn, dim)),
        "b_cnn": jnp.zeros((1, dim), jnp.float32),
        "w_txt": nrm(ks[2], (dim_txt, dim)),
        "b_txt": jnp.zeros((1, dim), jnp.float32),
        "pos_embedding": nrm(ks[3], (1, num_cnn_features + 1, dim), std=1.0),
        "cls_token": nrm(ks[4], (1, 1, dim), std=1.0),
        "w_h1": nrm(ks[5], (dim, mlp_dim)),
        "b_h1": jnp.zeros((1, mlp_dim), jnp.float32),
        "w_h2": nrm(ks[6], (mlp_dim, num_classes)),
        "b_h2": jnp.zeros((1, num_classes), jnp.float32),
        "layers": [],
    }
    for d in range(depth):
        lk = jax.random.split(ks[7 + d], 4)
        params["layers"].append({
            "wqkv": nrm(lk[0], (dim, 3 * dim)),
            "bqkv": jnp.zeros((1, 3 * dim), jnp.float32),
            "wo": nrm(lk[1], (dim, dim)),
            "bo": jnp.zeros((1, dim), jnp.float32),
            "ln1_g": jnp.ones((1, dim), jnp.float32),
            "ln1_b": jnp.zeros((1, dim), jnp.float32),
            "w1": nrm(lk[2], (dim, mlp_dim)),
            "b1": jnp.zeros((1, mlp_dim), jnp.float32),
            "w2": nrm(lk[3], (mlp_dim, dim)),
            "b2": jnp.zeros((1, dim), jnp.float32),
            "ln2_g": jnp.ones((1, dim), jnp.float32),
            "ln2_b": jnp.zeros((1, dim), jnp.float32),
        })
    return params


def prepare_params(params, heads):
    """One-time offline transforms: fold the two activation-free backbone
    linears into one matmul, fold 1/sqrt(hd) into the Q columns of the packed
    QKV in-proj, fold pos_embedding[0] into the cls token, cast matmul weights
    to bf16 (element-wise params stay f32)."""
    dim = params["w_cnn"].shape[1]
    hd = dim // heads
    scale = 1.0 / math.sqrt(hd)
    pos = params["pos_embedding"]

    prep = {
        "patch": params["patch"],
        "w_img": (params["w_patch"] @ params["w_cnn"]).astype(jnp.bfloat16),
        "b_img": (params["b_patch"] @ params["w_cnn"]
                  + params["b_cnn"]).astype(jnp.float32),
        "w_txt": params["w_txt"].astype(jnp.bfloat16),
        "b_txt": params["b_txt"].astype(jnp.float32),
        "pos_img": pos[:, 1:, :].astype(jnp.float32),
        "cls_pos": (params["cls_token"] + pos[:, :1, :]).astype(jnp.float32),
        "w_h1": params["w_h1"].astype(jnp.bfloat16),
        "b_h1": params["b_h1"].astype(jnp.float32),
        "w_h2": params["w_h2"].astype(jnp.bfloat16),
        "b_h2": params["b_h2"].astype(jnp.float32),
        "layers": [],
    }

    q_scale = jnp.concatenate([jnp.full((dim,), scale, jnp.float32),
                               jnp.ones((2 * dim,), jnp.float32)])
    for lp in params["layers"]:
        prep["layers"].append({
            "wqkv": (lp["wqkv"] * q_scale[None, :]).astype(jnp.bfloat16),
            "bqkv": (lp["bqkv"] * q_scale[None, :]).astype(jnp.float32),
            "wo": lp["wo"].astype(jnp.bfloat16),
            "bo": lp["bo"].astype(jnp.float32),
            "ln1_g": lp["ln1_g"], "ln1_b": lp["ln1_b"],
            "w1": lp["w1"].astype(jnp.bfloat16), "b1": lp["b1"],
            "w2": lp["w2"].astype(jnp.bfloat16), "b2": lp["b2"],
            "ln2_g": lp["ln2_g"], "ln2_b": lp["ln2_b"],
        })
    return prep


# ----------------------------------------------------------------------------
# Forward pass (mirrors ConTextTransformer.forward, eval mode).
# ----------------------------------------------------------------------------
def context_transformer_forward(params, img, txt, heads):
    B, C, H, W = img.shape
    P = params["patch"]
    gh, gw = H // P, W // P                          # 8x8 = 64 CNN tokens
    dim = params["w_img"].shape[1]
    mlp_dim = params["w_h1"].shape[1]
    S = 1 + gh * gw + txt.shape[1]

    vmem_cap, cores = _tpu_vmem_and_cores()

    # --- frozen CNN backbone stand-in ---
    # TODO(synk): pretrained ResNet50 backbone replaced by a deterministic
    # stride-P patch-linear stand-in (torchvision weights unavailable here);
    # its two activation-free linears are folded offline into one (C*P*P, dim)
    # matmul that runs inside the fused embedding kernel.
    patches = img.reshape(B, C, gh, P, gw, P).transpose(0, 2, 4, 1, 3, 5)
    patches = patches.reshape(B, gh * gw, C * P * P)

    # fused embedding kernel: image tokens (+pos) and text tokens, bf16 out.
    bt_e = _pick_batch_block(B, cores, lambda d: True)
    x = embed_tokens(patches, txt.astype(jnp.float32), params, bt_e)

    # --- transformer encoder (depth layers, post-LN, eval mode) ---
    budget = min(40 << 20, int(vmem_cap * 0.45))
    bt = _pick_batch_block(
        B, cores, lambda d: _encoder_vmem_bytes(d, S, dim, mlp_dim) <= budget)
    vmem_limit = int(min(vmem_cap * 3 // 4,
                         max(32 << 20,
                             _encoder_vmem_bytes(bt, S, dim, mlp_dim)
                             + (8 << 20))))
    for lp in params["layers"]:
        x = encoder_layer(x, lp, heads, bt, vmem_limit)

    # --- mlp_head on the cls token (fused Linear->GELU->Linear kernel) ---
    cls_tok = x[:, 0, :]
    bt_h = _pick_row_block(B, cores)
    return mlp_head(cls_tok, params["w_h1"], params["b_h1"],
                    params["w_h2"], params["b_h2"], bt_h)


if __name__ == "__main__":
    key = jax.random.PRNGKey(0)
    k_img, k_txt, k_par = jax.random.split(key, 3)

    # small shapes consistent with the module:
    #   64 CNN tokens (8x8 grid), dim_cnn=2048, fasttext dim=300
    B, C, H, W = 2, 3, 32, 32           # stand-in backbone: 4x4 patches -> 8x8 grid
    T = 15                              # text tokens -> total seq = 65 + 15 = 80
    dim, heads, depth, mlp_dim, num_classes = 32, 4, 2, 64, 10

    img = jax.random.normal(k_img, (B, C, H, W), jnp.float32)
    txt = jax.random.normal(k_txt, (B, T, 300), jnp.float32)

    raw_params = init_params(k_par, dim=dim, depth=depth, mlp_dim=mlp_dim,
                             num_classes=num_classes, channels=C, patch=4)
    params = prepare_params(raw_params, heads)

    logits = context_transformer_forward(params, img, txt, heads)
    jax.block_until_ready(logits)
    assert logits.shape == (B, num_classes)
    assert bool(jnp.all(jnp.isfinite(logits)))
    print("KERNEL_OK")
</pallas_src>

<mosaic_0001>
module attributes {stable_mosaic.version = 11 : i64} {
  func.func @_embed_kernel(%arg0: i32, %arg1: memref<2x64x48xf32, #tpu.memory_space<vmem>>, %arg2: memref<2x15x300xf32, #tpu.memory_space<vmem>>, %arg3: memref<48x32xbf16, #tpu.memory_space<vmem>>, %arg4: memref<1x32xf32, #tpu.memory_space<vmem>>, %arg5: memref<1x64x32xf32, #tpu.memory_space<vmem>>, %arg6: memref<300x32xbf16, #tpu.memory_space<vmem>>, %arg7: memref<1x32xf32, #tpu.memory_space<vmem>>, %arg8: memref<2x64x32xbf16, #tpu.memory_space<vmem>>, %arg9: memref<2x15x32xbf16, #tpu.memory_space<vmem>>) attributes {dimension_semantics = [#tpu.dimension_semantics<parallel>], iteration_bounds = array<i64: 1>, scalar_prefetch = 0 : i64, scratch_operands = 0 : i64, tpu.core_type = #tpu.core_type<tc>, window_params = [{transform_indices = @transform_0, window_bounds = array<i64: 2, 64, 48>}, {transform_indices = @transform_1, window_bounds = array<i64: 2, 15, 300>}, {pipeline_mode = #tpu.pipeline_mode<synchronous>, transform_indices = @transform_2, window_bounds = array<i64: 48, 32>}, {pipeline_mode = #tpu.pipeline_mode<synchronous>, transform_indices = @transform_3, window_bounds = array<i64: 1, 32>}, {pipeline_mode = #tpu.pipeline_mode<synchronous>, transform_indices = @transform_4, window_bounds = array<i64: 1, 64, 32>}, {pipeline_mode = #tpu.pipeline_mode<synchronous>, transform_indices = @transform_5, window_bounds = array<i64: 300, 32>}, {pipeline_mode = #tpu.pipeline_mode<synchronous>, transform_indices = @transform_6, window_bounds = array<i64: 1, 32>}, {transform_indices = @transform_7, window_bounds = array<i64: 2, 64, 32>}, {transform_indices = @transform_8, window_bounds = array<i64: 2, 15, 32>}]} {
    %c0 = arith.constant 0 : index
    %c0_0 = arith.constant 0 : index
    %c0_1 = arith.constant 0 : index
    %0 = vector.load %arg1[%c0, %c0_0, %c0_1] : memref<2x64x48xf32, #tpu.memory_space<vmem>>, vector<2x64x48xf32>
    %1 = arith.truncf %0 : vector<2x64x48xf32> to vector<2x64x48xbf16>
    %2 = vector.shape_cast %1 : vector<2x64x48xbf16> to vector<128x48xbf16>
    %c0_2 = arith.constant 0 : index
    %c0_3 = arith.constant 0 : index
    %3 = vector.load %arg3[%c0_2, %c0_3] : memref<48x32xbf16, #tpu.memory_space<vmem>>, vector<48x32xbf16>
    %cst = arith.constant dense<0.000000e+00> : vector<128x32xf32>
    %4 = tpu.matmul %2, %3, %cst {dimension_numbers = #tpu.dot_dimension_numbers<[1], [0], [0], [1], [0, 0, 1, 1], [], []>} : vector<128x48xbf16>, vector<48x32xbf16>, vector<128x32xf32> -> vector<128x32xf32>
    %c0_4 = arith.constant 0 : index
    %c0_5 = arith.constant 0 : index
    %5 = vector.load %arg4[%c0_4, %c0_5] : memref<1x32xf32, #tpu.memory_space<vmem>>, vector<1x32xf32>
    %6 = vector.broadcast %5 : vector<1x32xf32> to vector<128x32xf32>
    %7 = arith.addf %4, %6 : vector<128x32xf32>
    %8 = vector.shape_cast %7 : vector<128x32xf32> to vector<2x64x32xf32>
    %c0_6 = arith.constant 0 : index
    %c0_7 = arith.constant 0 : index
    %c0_8 = arith.constant 0 : index
    %9 = vector.load %arg5[%c0_6, %c0_7, %c0_8] : memref<1x64x32xf32, #tpu.memory_space<vmem>>, vector<1x64x32xf32>
    %10 = vector.broadcast %9 : vector<1x64x32xf32> to vector<2x64x32xf32>
    %11 = arith.addf %8, %10 : vector<2x64x32xf32>
    %12 = arith.truncf %11 : vector<2x64x32xf32> to vector<2x64x32xbf16>
    %c0_9 = arith.constant 0 : index
    %c0_10 = arith.constant 0 : index
    %c0_11 = arith.constant 0 : index
    %13 = vector.load %arg8[%c0_9, %c0_10, %c0_11] : memref<2x64x32xbf16, #tpu.memory_space<vmem>>, vector<2x64x32xbf16>
    tpu.vector_store %arg8[%c0_9, %c0_10, %c0_11], %12 {strides = array<i32>} : memref<2x64x32xbf16, #tpu.memory_space<vmem>>, vector<2x64x32xbf16>,
    %c0_12 = arith.constant 0 : index
    %c0_13 = arith.constant 0 : index
    %c0_14 = arith.constant 0 : index
    %14 = vector.load %arg2[%c0_12, %c0_13, %c0_14] : memref<2x15x300xf32, #tpu.memory_space<vmem>>, vector<2x15x300xf32>
    %15 = arith.truncf %14 : vector<2x15x300xf32> to vector<2x15x300xbf16>
    %16 = vector.shape_cast %15 : vector<2x15x300xbf16> to vector<30x300xbf16>
    %c0_15 = arith.constant 0 : index
    %c0_16 = arith.constant 0 : index
    %17 = vector.load %arg6[%c0_15, %c0_16] : memref<300x32xbf16, #tpu.memory_space<vmem>>, vector<300x32xbf16>
    %cst_17 = arith.constant dense<0.000000e+00> : vector<30x32xf32>
    %18 = tpu.matmul %16, %17, %cst_17 {dimension_numbers = #tpu.dot_dimension_numbers<[1], [0], [0], [1], [0, 0, 1, 1], [], []>} : vector<30x300xbf16>, vector<300x32xbf16>, vector<30x32xf32> -> vector<30x32xf32>
    %c0_18 = arith.constant 0 : index
    %c0_19 = arith.constant 0 : index
    %19 = vector.load %arg7[%c0_18, %c0_19] : memref<1x32xf32, #tpu.memory_space<vmem>>, vector<1x32xf32>
    %20 = vector.broadcast %19 : vector<1x32xf32> to vector<30x32xf32>
    %21 = arith.addf %18, %20 : vector<30x32xf32>
    %22 = vector.shape_cast %21 : vector<30x32xf32> to vector<2x15x32xf32>
    %23 = arith.truncf %22 : vector<2x15x32xf32> to vector<2x15x32xbf16>
    %c0_20 = arith.constant 0 : index
    %c0_21 = arith.constant 0 : index
    %c0_22 = arith.constant 0 : index
    %24 = vector.load %arg9[%c0_20, %c0_21, %c0_22] : memref<2x15x32xbf16, #tpu.memory_space<vmem>>, vector<2x15x32xbf16>
    tpu.vector_store %arg9[%c0_20, %c0_21, %c0_22], %23 {strides = array<i32>} : memref<2x15x32xbf16, #tpu.memory_space<vmem>>, vector<2x15x32xbf16>,
    return
  }
  func.func @transform_0(%arg0: i32) -> (i32, i32, i32) {
    %c0_i32 = arith.constant 0 : i32
    %c0_i32_0 = arith.constant 0 : i32
    %c0_i32_1 = arith.constant 0 : i32
    return %arg0, %c0_i32, %c0_i32_0 : i32, i32, i32
  }
  func.func @transform_1(%arg0: i32) -> (i32, i32, i32) {
    %c0_i32 = arith.constant 0 : i32
    %c0_i32_0 = arith.constant 0 : i32
    %c0_i32_1 = arith.constant 0 : i32
    return %arg0, %c0_i32, %c0_i32_0 : i32, i32, i32
  }
  func.func @transform_2(%arg0: i32) -> (i32, i32) {
    %c0_i32 = arith.constant 0 : i32
    %c0_i32_0 = arith.constant 0 : i32
    %c0_i32_1 = arith.constant 0 : i32
    return %c0_i32, %c0_i32_0 : i32, i32
  }
  func.func @transform_3(%arg0: i32) -> (i32, i32) {
    %c0_i32 = arith.constant 0 : i32
    %c0_i32_0 = arith.constant 0 : i32
    %c0_i32_1 = arith.constant 0 : i32
    return %c0_i32, %c0_i32_0 : i32, i32
  }
  func.func @transform_4(%arg0: i32) -> (i32, i32, i32) {
    %c0_i32 = arith.constant 0 : i32
    %c0_i32_0 = arith.constant 0 : i32
    %c0_i32_1 = arith.constant 0 : i32
    %c0_i32_2 = arith.constant 0 : i32
    return %c0_i32, %c0_i32_0, %c0_i32_1 : i32, i32, i32
  }
  func.func @transform_5(%arg0: i32) -> (i32, i32) {
    %c0_i32 = arith.constant 0 : i32
    %c0_i32_0 = arith.constant 0 : i32
    %c0_i32_1 = arith.constant 0 : i32
    return %c0_i32, %c0_i32_0 : i32, i32
  }
  func.func @transform_6(%arg0: i32) -> (i32, i32) {
    %c0_i32 = arith.constant 0 : i32
    %c0_i32_0 = arith.constant 0 : i32
    %c0_i32_1 = arith.constant 0 : i32
    return %c0_i32, %c0_i32_0 : i32, i32
  }
  func.func @transform_7(%arg0: i32) -> (i32, i32, i32) {
    %c0_i32 = arith.constant 0 : i32
    %c0_i32_0 = arith.constant 0 : i32
    %c0_i32_1 = arith.constant 0 : i32
    return %arg0, %c0_i32, %c0_i32_0 : i32, i32, i32
  }
  func.func @transform_8(%arg0: i32) -> (i32, i32, i32) {
    %c0_i32 = arith.constant 0 : i32
    %c0_i32_0 = arith.constant 0 : i32
    %c0_i32_1 = arith.constant 0 : i32
    return %arg0, %c0_i32, %c0_i32_0 : i32, i32, i32
  }
}

</mosaic_0001>

<llo_original>
// kernel: tpu_custom_call.1
$region0: #{tpu_custom_call.1}
  #allocation0 [shape = 'u32[]', space=smem, size = 0x4, offset = 0x4, fixed_abs, tag = 'smem constant byte address 0x4 - core index']
  #allocation1 [shape = 'u32[72,128]{1,0:T(1,128)}', space=vmem, size = 0x9000, scoped, tag = 'internal scratch']
  %s0 = inlined_call_operand.vmem [shape: f32[2,64,48], index: 0, kind: input, shape index: {}]
  %s1 = inlined_call_operand.vmem [shape: f32[2,15,300], index: 1, kind: input, shape index: {}]
  %s2 = inlined_call_operand.vmem [shape: bf16[48,32], index: 2, kind: input, shape index: {}]
  %s3 = inlined_call_operand.vmem [shape: f32[1,32], index: 3, kind: input, shape index: {}]
  %s4 = inlined_call_operand.vmem [shape: f32[1,64,32], index: 4, kind: input, shape index: {}]
  %s5 = inlined_call_operand.vmem [shape: bf16[300,32], index: 5, kind: input, shape index: {}]
  %s6 = inlined_call_operand.vmem [shape: f32[1,32], index: 6, kind: input, shape index: {}]
  %s7 = inlined_call_operand.vmem [shape: bf16[2,64,32], index: 7, kind: output, shape index: {0}]
  %s8 = inlined_call_operand.vmem [shape: bf16[2,15,32], index: 8, kind: output, shape index: {1}]
  %9 = xla_tuple %s7, %s8
  %s10 = sld [smem:[#allocation0]]
  $region46: #{tpu_custom_call.1} parent=0
    _
  %s12 = ssub.s32 1, %s10
  %s13 = scalar_select 0, %s12, %s10
  // Predicated region
  $region2: #{tpu_custom_call.1} parent=0 // pred_check
    _
  $region3: #{tpu_custom_call.1} parent=0 // pred_check_branch
    %15 = sbr.rel (0) target = $region5
  $region4: #{tpu_custom_call.1} parent=0 // pred_region
    _
  $region5: #{tpu_custom_call.1} parent=0 // pred_fallthru
    _
  // Predicated region
  $region6: #{tpu_custom_call.1} parent=0 // pred_check
    _
  $region7: #{tpu_custom_call.1} parent=0 // pred_check_branch
    %17 = sbr.rel (0) target = $region9
  $region8: #{tpu_custom_call.1} parent=0 // pred_region
    _
  $region9: #{tpu_custom_call.1} parent=0 // pred_fallthru
    _
  // Predicated region
  $region10: #{tpu_custom_call.1} parent=0 // pred_check
    _
  $region11: #{tpu_custom_call.1} parent=0 // pred_check_branch
    %19 = sbr.rel (0) target = $region13
  $region12: #{tpu_custom_call.1} parent=0 // pred_region
    _
  $region13: #{tpu_custom_call.1} parent=0 // pred_fallthru
    _
  // Predicated region
  $region14: #{tpu_custom_call.1} parent=0 // pred_check
    _
  $region15: #{tpu_custom_call.1} parent=0 // pred_check_branch
    %21 = sbr.rel (0) target = $region17
  $region16: #{tpu_custom_call.1} parent=0 // pred_region
    _
  $region17: #{tpu_custom_call.1} parent=0 // pred_fallthru
    _
  // Predicated region
  $region18: #{tpu_custom_call.1} parent=0 // pred_check
    _
  $region19: #{tpu_custom_call.1} parent=0 // pred_check_branch
    %23 = sbr.rel (0) target = $region21
  $region20: #{tpu_custom_call.1} parent=0 // pred_region
    _
  $region21: #{tpu_custom_call.1} parent=0 // pred_fallthru
    _
  // Predicated region
  $region22: #{tpu_custom_call.1} parent=0 // pred_check
    _
  $region23: #{tpu_custom_call.1} parent=0 // pred_check_branch
    %25 = sbr.rel (0) target = $region25
  $region24: #{tpu_custom_call.1} parent=0 // pred_region
    _
  $region25: #{tpu_custom_call.1} parent=0 // pred_fallthru
    _
  // Predicated region
  $region26: #{tpu_custom_call.1} parent=0 // pred_check
    _
  $region27: #{tpu_custom_call.1} parent=0 // pred_check_branch
    %27 = sbr.rel (0) target = $region29
  $region28: #{tpu_custom_call.1} parent=0 // pred_region
    _
  $region29: #{tpu_custom_call.1} parent=0 // pred_fallthru
    _
  %v29 = vld [vmem:[%s0] sm:$0xff]
  %v30 = vld [vmem:[%s0 + $0x8] sm:$0xff]
  %v31 = vld [vmem:[%s0 + $0x10] sm:$0xff]
  %v32 = vld [vmem:[%s0 + $0x18] sm:$0xff]
  %v33 = vld [vmem:[%s0 + $0x20] sm:$0xff]
  %v34 = vld [vmem:[%s0 + $0x28] sm:$0xff]
  %v35 = vld [vmem:[%s0 + $0x30] sm:$0xff]
  %v36 = vld [vmem:[%s0 + $0x38] sm:$0xff]
  %v37 = vld [vmem:[%s0 + $0x40] sm:$0xff]
  %v38 = vld [vmem:[%s0 + $0x48] sm:$0xff]
  %v39 = vld [vmem:[%s0 + $0x50] sm:$0xff]
  %v40 = vld [vmem:[%s0 + $0x58] sm:$0xff]
  %v41 = vld [vmem:[%s0 + $0x60] sm:$0xff]
  %v42 = vld [vmem:[%s0 + $0x68] sm:$0xff]
  %v43 = vld [vmem:[%s0 + $0x70] sm:$0xff]
  %v44 = vld [vmem:[%s0 + $0x78] sm:$0xff]
  %v45 = vpack.c.bf16 %v29, %v29
  %v46 = vpack.c.bf16 %v30, %v30
  %v47 = vpack.c.bf16 %v31, %v31
  %v48 = vpack.c.bf16 %v32, %v32
  %v49 = vpack.c.bf16 %v33, %v33
  %v50 = vpack.c.bf16 %v34, %v34
  %v51 = vpack.c.bf16 %v35, %v35
  %v52 = vpack.c.bf16 %v36, %v36
  %v53 = vpack.c.bf16 %v37, %v37
  %v54 = vpack.c.bf16 %v38, %v38
  %v55 = vpack.c.bf16 %v39, %v39
  %v56 = vpack.c.bf16 %v40, %v40
  %v57 = vpack.c.bf16 %v41, %v41
  %v58 = vpack.c.bf16 %v42, %v42
  %v59 = vpack.c.bf16 %v43, %v43
  %v60 = vpack.c.bf16 %v44, %v44
  %v61 = vld [vmem:[%s2] sm:$0xf]
  %v62 = vld [vmem:[%s2 + $0x4] sm:$0xf]
  %v63 = vld [vmem:[%s2 + $0x8] sm:$0xf]
  %v64 = vld [vmem:[%s2 + $0xc] sm:$0xf]
  %v65 = vld [vmem:[%s2 + $0x10] sm:$0xf]
  %v66 = vld [vmem:[%s2 + $0x14] sm:$0xf]
  %v67 = vld [vmem:[%s3] sm:$0x1]
  %v69 = vperm.slane %v67, 0
  %v87 = vunpack.c.l.b16 %v45
  %v88 = vunpack.c.l.b16 %v46
  %v89 = vunpack.c.l.b16 %v47
  %v90 = vunpack.c.l.b16 %v48
  %v91 = vunpack.c.l.b16 %v49
  %v92 = vunpack.c.l.b16 %v50
  %v93 = vunpack.c.l.b16 %v51
  %v94 = vunpack.c.l.b16 %v52
  %v95 = vunpack.c.l.b16 %v53
  %v96 = vunpack.c.l.b16 %v54
  %v97 = vunpack.c.l.b16 %v55
  %v98 = vunpack.c.l.b16 %v56
  %v99 = vunpack.c.l.b16 %v57
  %v100 = vunpack.c.l.b16 %v58
  %v101 = vunpack.c.l.b16 %v59
  %v102 = vunpack.c.l.b16 %v60
  %v103 = vpack.c.b16 %v88, %v87
  %v104 = vpack.c.b16 %v90, %v89
  %v105 = vpack.c.b16 %v92, %v91
  %v106 = vpack.c.b16 %v94, %v93
  %v107 = vpack.c.b16 %v96, %v95
  %v108 = vpack.c.b16 %v98, %v97
  %v109 = vpack.c.b16 %v100, %v99
  %v110 = vpack.c.b16 %v102, %v101
  %v117 = vunpack.c.l.b16 %v61
  %v118 = vunpack.c.l.b16 %v62
  %v119 = vunpack.c.l.b16 %v63
  %v120 = vunpack.c.l.b16 %v64
  %v121 = vunpack.c.l.b16 %v65
  %v122 = vunpack.c.l.b16 %v66
  %v123 = vpack.c.b16 %v118, %v117
  %v124 = vpack.c.b16 %v120, %v119
  %v125 = vpack.c.b16 %v122, %v121
  %vm129 = vcmask 392192
  %v131 = vsel %vm129, %v103, 0
  %v134 = vsel %vm129, %v104, 0
  %v137 = vsel %vm129, %v105, 0
  %v140 = vsel %vm129, %v106, 0
  %v143 = vsel %vm129, %v107, 0
  %v146 = vsel %vm129, %v108, 0
  %v149 = vsel %vm129, %v109, 0
  %v152 = vsel %vm129, %v110, 0
  %154 = vmatpush.bf16.msra.mxu0 0
  %155 = vmatpush.bf16.msra.mxu0 0
  %156 = vmatpush.bf16.msra.mxu0 0
  %157 = vmatpush.bf16.msra.mxu0 0
  %158 = vmatpush.bf16.msra.mxu0 0
  %159 = vmatpush.bf16.msra.mxu0 %v125
  %160 = vmatpush.bf16.msra.mxu0 %v124
  %161 = vmatpush.bf16.msra.mxu0 %v123
  %162 = vmatmul.bf16.gmra.mxu0 %v131
  %v163 = vpop.f32.mrf.mxu0
  %v164 = vadd.f32 %v69, %v163
  %v165 = vpop.f32.mrf.mxu0
  %v166 = vadd.f32 %v69, %v165
  %167 = vmatmul.bf16.gmra.mxu0 %v134
  %v168 = vpop.f32.mrf.mxu0
  %v169 = vadd.f32 %v69, %v168
  %v170 = vpop.f32.mrf.mxu0
  %v171 = vadd.f32 %v69, %v170
  %172 = vmatmul.bf16.gmra.mxu0 %v137
  %v173 = vpop.f32.mrf.mxu0
  %v174 = vadd.f32 %v69, %v173
  %v175 = vpop.f32.mrf.mxu0
  %v176 = vadd.f32 %v69, %v175
  %177 = vmatmul.bf16.gmra.mxu0 %v140
  %v178 = vpop.f32.mrf.mxu0
  %v179 = vadd.f32 %v69, %v178
  %v180 = vpop.f32.mrf.mxu0
  %v181 = vadd.f32 %v69, %v180
  %182 = vmatmul.bf16.gmra.mxu0 %v143
  %v183 = vpop.f32.mrf.mxu0
  %v184 = vadd.f32 %v69, %v183
  %v185 = vpop.f32.mrf.mxu0
  %v186 = vadd.f32 %v69, %v185
  %187 = vmatmul.bf16.gmra.mxu0 %v146
  %v188 = vpop.f32.mrf.mxu0
  %v189 = vadd.f32 %v69, %v188
  %v190 = vpop.f32.mrf.mxu0
  %v191 = vadd.f32 %v69, %v190
  %192 = vmatmul.bf16.gmra.mxu0 %v149
  %v193 = vpop.f32.mrf.mxu0
  %v194 = vadd.f32 %v69, %v193
  %v195 = vpop.f32.mrf.mxu0
  %v196 = vadd.f32 %v69, %v195
  %197 = vmatmul.bf16.gmra.mxu0 %v152
  %v198 = vpop.f32.mrf.mxu0
  %v199 = vadd.f32 %v69, %v198
  %v200 = vpop.f32.mrf.mxu0
  %v201 = vadd.f32 %v69, %v200
  %202 = vdwg.mxu0
  %v203 = vld [vmem:[%s4] sm:$0xff]
  %v204 = vld [vmem:[%s4 + $0x8] sm:$0xff]
  %v205 = vld [vmem:[%s4 + $0x10] sm:$0xff]
  %v206 = vld [vmem:[%s4 + $0x18] sm:$0xff]
  %v207 = vld [vmem:[%s4 + $0x20] sm:$0xff]
  %v208 = vld [vmem:[%s4 + $0x28] sm:$0xff]
  %v209 = vld [vmem:[%s4 + $0x30] sm:$0xff]
  %v210 = vld [vmem:[%s4 + $0x38] sm:$0xff]
  %v211 = vadd.f32 %v164, %v203
  %v212 = vadd.f32 %v166, %v204
  %v213 = vadd.f32 %v169, %v205
  %v214 = vadd.f32 %v171, %v206
  %v215 = vadd.f32 %v174, %v207
  %v216 = vadd.f32 %v176, %v208
  %v217 = vadd.f32 %v179, %v209
  %v218 = vadd.f32 %v181, %v210
  %v219 = vadd.f32 %v184, %v203
  %v220 = vadd.f32 %v186, %v204
  %v221 = vadd.f32 %v189, %v205
  %v222 = vadd.f32 %v191, %v206
  %v223 = vadd.f32 %v194, %v207
  %v224 = vadd.f32 %v196, %v208
  %v225 = vadd.f32 %v199, %v209
  %v226 = vadd.f32 %v201, %v210
  %v227 = vpack.c.bf16 %v211, %v211
  %v228 = vpack.c.bf16 %v212, %v212
  %v229 = vpack.c.bf16 %v213, %v213
  %v230 = vpack.c.bf16 %v214, %v214
  %v231 = vpack.c.bf16 %v215, %v215
  %v232 = vpack.c.bf16 %v216, %v216
  %v233 = vpack.c.bf16 %v217, %v217
  %v234 = vpack.c.bf16 %v218, %v218
  %v235 = vpack.c.bf16 %v219, %v219
  %v236 = vpack.c.bf16 %v220, %v220
  %v237 = vpack.c.bf16 %v221, %v221
  %v238 = vpack.c.bf16 %v222, %v222
  %v239 = vpack.c.bf16 %v223, %v223
  %v240 = vpack.c.bf16 %v224, %v224
  %v241 = vpack.c.bf16 %v225, %v225
  %v242 = vpack.c.bf16 %v226, %v226
  %vm243 = vcmask 257024
  %244 = vst.msk [vmem:[%s7] sm:$0xf] %vm243, %v227
  %245 = vst.msk [vmem:[%s7 + $0x4] sm:$0xf] %vm243, %v228
  %246 = vst.msk [vmem:[%s7 + $0x8] sm:$0xf] %vm243, %v229
  %247 = vst.msk [vmem:[%s7 + $0xc] sm:$0xf] %vm243, %v230
  %248 = vst.msk [vmem:[%s7 + $0x10] sm:$0xf] %vm243, %v231
  %249 = vst.msk [vmem:[%s7 + $0x14] sm:$0xf] %vm243, %v232
  %250 = vst.msk [vmem:[%s7 + $0x18] sm:$0xf] %vm243, %v233
  %251 = vst.msk [vmem:[%s7 + $0x1c] sm:$0xf] %vm243, %v234
  %252 = vst.msk [vmem:[%s7 + $0x20] sm:$0xf] %vm243, %v235
  %253 = vst.msk [vmem:[%s7 + $0x24] sm:$0xf] %vm243, %v236
  %254 = vst.msk [vmem:[%s7 + $0x28] sm:$0xf] %vm243, %v237
  %255 = vst.msk [vmem:[%s7 + $0x2c] sm:$0xf] %vm243, %v238
  %256 = vst.msk [vmem:[%s7 + $0x30] sm:$0xf] %vm243, %v239
  %257 = vst.msk [vmem:[%s7 + $0x34] sm:$0xf] %vm243, %v240
  %258 = vst.msk [vmem:[%s7 + $0x38] sm:$0xf] %vm243, %v241
  %259 = vst.msk [vmem:[%s7 + $0x3c] sm:$0xf] %vm243, %v242
  %v260 = vld [vmem:[%s1] sm:$0xff]
  %v261 = vld [vmem:[%s1 + $0x8] sm:$0xff]
  %v262 = vld [vmem:[%s1 + $0x10] sm:$0xff]
  %v263 = vld [vmem:[%s1 + $0x18] sm:$0x7f]
  %v264 = vld [vmem:[%s1 + $0x20] sm:$0x7f]
  %v265 = vld [vmem:[%s1 + $0x28] sm:$0x7f]
  %v266 = vld [vmem:[%s1 + $0x30] sm:$0xff]
  %v267 = vld [vmem:[%s1 + $0x38] sm:$0xff]
  %v268 = vld [vmem:[%s1 + $0x40] sm:$0xff]
  %v269 = vld [vmem:[%s1 + $0x48] sm:$0x7f]
  %v270 = vld [vmem:[%s1 + $0x50] sm:$0x7f]
  %v271 = vld [vmem:[%s1 + $0x58] sm:$0x7f]
  %v272 = vpack.c.bf16 %v261, %v260
  %v273 = vpack.c.bf16 %v262, %v262
  %v274 = vpack.c.bf16 %v264, %v263
  %v275 = vpack.c.bf16 %v265, %v265
  %v276 = vpack.c.bf16 %v267, %v266
  %v277 = vpack.c.bf16 %v268, %v268
  %v278 = vpack.c.bf16 %v270, %v269
  %v279 = vpack.c.bf16 %v271, %v271
  %v288 = vrot.slane %v272, 3
  %v289 = vrot.slane %v273, 6
  %v290 = vrot.slane %v273, 1
  %v291 = vrot.slane %v274, 3
  %v292 = vrot.slane %v275, 6
  %v293 = vrot.slane %v275, 1
  %v294 = vrot.slane %v276, 3
  %v295 = vrot.slane %v277, 6
  %v296 = vrot.slane %v277, 1
  %v297 = vrot.slane %v278, 3
  %v298 = vrot.slane %v279, 6
  %v299 = vrot.slane %v279, 1
  %vm300 = vcmask 1040384
  %v303 = vsel %vm300, %v272, %v288
  %vm304 = vcmask 1042434
  %v307 = vsel %vm304, %v289, %v290
  %vm308 = vcmask 1041408
  %v309 = vsel %vm308, %v303, %v307
  %vm311 = vcmask 1041409
  %v312 = vsel %vm311, %v272, %v288
  %vm313 = vcmask 1043459
  %v314 = vsel %vm313, %v289, %v290
  %vm315 = vcmask 1042433
  %v316 = vsel %vm315, %v312, %v314
  %v318 = vrot.slane %v316, 1
  %v319 = vsel %vm304, %v272, %v288
  %vm320 = vcmask 1044484
  %v321 = vsel %vm320, %v289, %v290
  %vm322 = vcmask 1043458
  %v323 = vsel %vm322, %v319, %v321
  %v325 = vrot.slane %v323, 2
  %v326 = vsel %vm313, %v272, %v288
  %vm327 = vcmask 1045509
  %v328 = vsel %vm327, %v289, %v290
  %vm329 = vcmask 1044483
  %v330 = vsel %vm329, %v326, %v328
  %v332 = vrot.slane %v330, 3
  %v335 = vsel %vm300, %v274, %v291
  %v338 = vsel %vm304, %v292, %v293
  %v339 = vsel %vm308, %v335, %v338
  %v341 = vsel %vm311, %v274, %v291
  %v342 = vsel %vm313, %v292, %v293
  %v343 = vsel %vm315, %v341, %v342
  %v345 = vrot.slane %v343, 1
  %v346 = vsel %vm304, %v274, %v291
  %v347 = vsel %vm320, %v292, %v293
  %v348 = vsel %vm322, %v346, %v347
  %v350 = vrot.slane %v348, 2
  %v351 = vsel %vm313, %v274, %v291
  %v352 = vsel %vm327, %v292, %v293
  %v353 = vsel %vm329, %v351, %v352
  %v355 = vrot.slane %v353, 3
  %v358 = vsel %vm300, %v276, %v294
  %v361 = vsel %vm304, %v295, %v296
  %v362 = vsel %vm308, %v358, %v361
  %v364 = vsel %vm311, %v276, %v294
  %v365 = vsel %vm313, %v295, %v296
  %v366 = vsel %vm315, %v364, %v365
  %v368 = vrot.slane %v366, 1
  %v369 = vsel %vm304, %v276, %v294
  %v370 = vsel %vm320, %v295, %v296
  %v371 = vsel %vm322, %v369, %v370
  %v373 = vrot.slane %v371, 2
  %v374 = vsel %vm313, %v276, %v294
  %v375 = vsel %vm327, %v295, %v296
  %v376 = vsel %vm329, %v374, %v375
  %v378 = vrot.slane %v376, 3
  %v381 = vsel %vm300, %v278, %v297
  %v384 = vsel %vm304, %v298, %v299
  %v385 = vsel %vm308, %v381, %v384
  %v387 = vsel %vm311, %v278, %v297
  %v388 = vsel %vm313, %v298, %v299
  %v389 = vsel %vm315, %v387, %v388
  %v391 = vrot.slane %v389, 1
  %v392 = vsel %vm304, %v278, %v297
  %v393 = vsel %vm320, %v298, %v299
  %v394 = vsel %vm322, %v392, %v393
  %v396 = vrot.slane %v394, 2
  %v397 = vsel %vm313, %v278, %v297
  %v398 = vsel %vm327, %v298, %v299
  %v399 = vsel %vm329, %v397, %v398
  %v401 = vrot.slane %v399, 3
  %v402 = vunpack.i.l.s16 %v309
  %v403 = vunpack.i.h.s16 %v309
  %v404 = vunpack.i.l.s16 %v318
  %v405 = vunpack.i.h.s16 %v318
  %v406 = vunpack.i.l.s16 %v325
  %v407 = vunpack.i.h.s16 %v325
  %v408 = vunpack.i.l.s16 %v332
  %v409 = vunpack.i.h.s16 %v332
  %v410 = vunpack.i.l.s16 %v339
  %v411 = vunpack.i.h.s16 %v339
  %v412 = vunpack.i.l.s16 %v345
  %v413 = vunpack.i.h.s16 %v345
  %v414 = vunpack.i.l.s16 %v350
  %v415 = vunpack.i.h.s16 %v350
  %v416 = vunpack.i.l.s16 %v355
  %v417 = vunpack.i.l.s16 %v362
  %v418 = vunpack.i.h.s16 %v362
  %v419 = vunpack.i.l.s16 %v368
  %v420 = vunpack.i.h.s16 %v368
  %v421 = vunpack.i.l.s16 %v373
  %v422 = vunpack.i.h.s16 %v373
  %v423 = vunpack.i.l.s16 %v378
  %v424 = vunpack.i.h.s16 %v378
  %v425 = vunpack.i.l.s16 %v385
  %v426 = vunpack.i.h.s16 %v385
  %v427 = vunpack.i.l.s16 %v391
  %v428 = vunpack.i.h.s16 %v391
  %v429 = vunpack.i.l.s16 %v396
  %v430 = vunpack.i.h.s16 %v396
  %v431 = vunpack.i.l.s16 %v401
  %v432 = vld [vmem:[%s5] sm:$0xf]
  %v433 = vld [vmem:[%s5 + $0x4] sm:$0xf]
  %v434 = vld [vmem:[%s5 + $0x8] sm:$0xf]
  %v435 = vld [vmem:[%s5 + $0xc] sm:$0xf]
  %v436 = vld [vmem:[%s5 + $0x10] sm:$0xf]
  %v437 = vld [vmem:[%s5 + $0x14] sm:$0xf]
  %v438 = vld [vmem:[%s5 + $0x18] sm:$0xf]
  %v439 = vld [vmem:[%s5 + $0x1c] sm:$0xf]
  %v440 = vld [vmem:[%s5 + $0x20] sm:$0xf]
  %v441 = vld [vmem:[%s5 + $0x24] sm:$0xf]
  %v442 = vld [vmem:[%s5 + $0x28] sm:$0xf]
  %v443 = vld [vmem:[%s5 + $0x2c] sm:$0xf]
  %v444 = vld [vmem:[%s5 + $0x30] sm:$0xf]
  %v445 = vld [vmem:[%s5 + $0x34] sm:$0xf]
  %v446 = vld [vmem:[%s5 + $0x38] sm:$0xf]
  %v447 = vld [vmem:[%s5 + $0x3c] sm:$0xf]
  %v448 = vld [vmem:[%s5 + $0x40] sm:$0xf]
  %v449 = vld [vmem:[%s5 + $0x44] sm:$0xf]
  %v450 = vld [vmem:[%s5 + $0x48] sm:$0xf]
  %v451 = vld [vmem:[%s5 + $0x4c] sm:$0xf]
  %v452 = vld [vmem:[%s5 + $0x50] sm:$0xf]
  %v453 = vld [vmem:[%s5 + $0x54] sm:$0xf]
  %v454 = vld [vmem:[%s5 + $0x58] sm:$0xf]
  %v455 = vld [vmem:[%s5 + $0x5c] sm:$0xf]
  %v456 = vld [vmem:[%s5 + $0x60] sm:$0xf]
  %v457 = vld [vmem:[%s5 + $0x64] sm:$0xf]
  %v458 = vld [vmem:[%s5 + $0x68] sm:$0xf]
  %v459 = vld [vmem:[%s5 + $0x6c] sm:$0xf]
  %v460 = vld [vmem:[%s5 + $0x70] sm:$0xf]
  %v461 = vld [vmem:[%s5 + $0x74] sm:$0xf]
  %v462 = vld [vmem:[%s5 + $0x78] sm:$0xf]
  %v463 = vld [vmem:[%s5 + $0x7c] sm:$0xf]
  %v464 = vld [vmem:[%s5 + $0x80] sm:$0xf]
  %v465 = vld [vmem:[%s5 + $0x84] sm:$0xf]
  %v466 = vld [vmem:[%s5 + $0x88] sm:$0xf]
  %v467 = vld [vmem:[%s5 + $0x8c] sm:$0xf]
  %v468 = vld [vmem:[%s5 + $0x90] sm:$0xf]
  %v469 = vld [vmem:[%s5 + $0x94] sm:$0x3]
  %v470 = vld [vmem:[%s6] sm:$0x1]
  %v472 = vperm.slane %v470, 0
  %v474 = vpack.i.b16 %v403, %v402
  %v475 = vpack.i.b16 %v405, %v404
  %v476 = vpack.i.b16 %v407, %v406
  %v477 = vpack.i.b16 %v409, %v408
  %v478 = vpack.i.b16 %v411, %v410
  %v479 = vpack.i.b16 %v413, %v412
  %v480 = vpack.i.b16 %v415, %v414
  %v481 = vpack.i.b16 %v417, %v416
  %v482 = vpack.i.b16 %v419, %v418
  %v483 = vpack.i.b16 %v421, %v420
  %v484 = vpack.i.b16 %v423, %v422
  %v485 = vpack.i.b16 %v425, %v424
  %v486 = vpack.i.b16 %v427, %v426
  %v487 = vpack.i.b16 %v429, %v428
  %v488 = vpack.i.b16 %v431, %v430
  %490 = vst [vmem:[#allocation1] ss:$9 sm:$0xff] %v474
  %s492 = scalar_lea.vmem [#allocation1], 1
  %493 = vst [vmem:[%s492] ss:$9 sm:$0xff] %v475
  %s495 = scalar_lea.vmem [#allocation1], 2
  %496 = vst [vmem:[%s495] ss:$9 sm:$0xff] %v476
  %s498 = scalar_lea.vmem [#allocation1], 3
  %499 = vst [vmem:[%s498] ss:$9 sm:$0xff] %v477
  %s501 = scalar_lea.vmem [#allocation1], 4
  %502 = vst [vmem:[%s501] ss:$9 sm:$0xff] %v478
  %s504 = scalar_lea.vmem [#allocation1], 5
  %505 = vst [vmem:[%s504] ss:$9 sm:$0xff] %v479
  %s507 = scalar_lea.vmem [#allocation1], 6
  %508 = vst [vmem:[%s507] ss:$9 sm:$0xff] %v480
  %s510 = scalar_lea.vmem [#allocation1], 7
  %511 = vst [vmem:[%s510] ss:$9 sm:$0xff] %v481
  %v512 = vld [vmem:[#allocation1] sm:$0xff]
  %v513 = vld [vmem:[#allocation1 + $0x9] sm:$0xff]
  %v514 = vld [vmem:[#allocation1 + $0x12] sm:$0xff]
  %516 = vst [vmem:[#allocation1] ss:$9 sm:$0xff] %v482
  %518 = vst [vmem:[%s492] ss:$9 sm:$0xff] %v483
  %520 = vst [vmem:[%s495] ss:$9 sm:$0xff] %v484
  %522 = vst [vmem:[%s498] ss:$9 sm:$0xff] %v485
  %524 = vst [vmem:[%s501] ss:$9 sm:$0xff] %v486
  %526 = vst [vmem:[%s504] ss:$9 sm:$0xff] %v487
  %528 = vst [vmem:[%s507] ss:$9 sm:$0xff] %v488
  %v529 = vld [vmem:[#allocation1] sm:$0xff]
  %v530 = vld [vmem:[#allocation1 + $0x9] sm:$0xff]
  %v531 = vld [vmem:[#allocation1 + $0x12] sm:$0xff]
  %v574 = vunpack.c.l.b16 %v432
  %v575 = vunpack.c.l.b16 %v433
  %v576 = vunpack.c.l.b16 %v434
  %v577 = vunpack.c.l.b16 %v435
  %v578 = vunpack.c.l.b16 %v436
  %v579 = vunpack.c.l.b16 %v437
  %v580 = vunpack.c.l.b16 %v438
  %v581 = vunpack.c.l.b16 %v439
  %v582 = vunpack.c.l.b16 %v440
  %v583 = vunpack.c.l.b16 %v441
  %v584 = vunpack.c.l.b16 %v442
  %v585 = vunpack.c.l.b16 %v443
  %v586 = vunpack.c.l.b16 %v444
  %v587 = vunpack.c.l.b16 %v445
  %v588 = vunpack.c.l.b16 %v446
  %v589 = vunpack.c.l.b16 %v447
  %v590 = vunpack.c.l.b16 %v448
  %v591 = vunpack.c.l.b16 %v449
  %v592 = vunpack.c.l.b16 %v450
  %v593 = vunpack.c.l.b16 %v451
  %v594 = vunpack.c.l.b16 %v452
  %v595 = vunpack.c.l.b16 %v453
  %v596 = vunpack.c.l.b16 %v454
  %v597 = vunpack.c.l.b16 %v455
  %v598 = vunpack.c.l.b16 %v456
  %v599 = vunpack.c.l.b16 %v457
  %v600 = vunpack.c.l.b16 %v458
  %v601 = vunpack.c.l.b16 %v459
  %v602 = vunpack.c.l.b16 %v460
  %v603 = vunpack.c.l.b16 %v461
  %v604 = vunpack.c.l.b16 %v462
  %v605 = vunpack.c.l.b16 %v463
  %v606 = vunpack.c.l.b16 %v464
  %v607 = vunpack.c.l.b16 %v465
  %v608 = vunpack.c.l.b16 %v466
  %v609 = vunpack.c.l.b16 %v467
  %v610 = vunpack.c.l.b16 %v468
  %v611 = vunpack.c.l.b16 %v469
  %v612 = vpack.c.b16 %v575, %v574
  %v613 = vpack.c.b16 %v577, %v576
  %v614 = vpack.c.b16 %v579, %v578
  %v615 = vpack.c.b16 %v581, %v580
  %v616 = vpack.c.b16 %v583, %v582
  %v617 = vpack.c.b16 %v585, %v584
  %v618 = vpack.c.b16 %v587, %v586
  %v619 = vpack.c.b16 %v589, %v588
  %v620 = vpack.c.b16 %v591, %v590
  %v621 = vpack.c.b16 %v593, %v592
  %v622 = vpack.c.b16 %v595, %v594
  %v623 = vpack.c.b16 %v597, %v596
  %v624 = vpack.c.b16 %v599, %v598
  %v625 = vpack.c.b16 %v601, %v600
  %v626 = vpack.c.b16 %v603, %v602
  %v627 = vpack.c.b16 %v605, %v604
  %v628 = vpack.c.b16 %v607, %v606
  %v629 = vpack.c.b16 %v609, %v608
  %v630 = vpack.c.b16 %v611, %v610
  %vm649 = vcmask 359424
  %v650 = vsel %vm649, %v514, 0
  %v652 = vsel %vm649, %v531, 0
  %vm654 = vcmask 1045504
  %v656 = vsel %vm654, %v630, 0
  %658 = vmatpush.bf16.msra.mxu0 %v619
  %659 = vmatpush.bf16.msra.mxu0 %v618
  %660 = vmatpush.bf16.msra.mxu0 %v617
  %661 = vmatpush.bf16.msra.mxu0 %v616
  %662 = vmatpush.bf16.msra.mxu0 %v615
  %663 = vmatpush.bf16.msra.mxu0 %v614
  %664 = vmatpush.bf16.msra.mxu0 %v613
  %665 = vmatpush.bf16.msra.mxu0 %v612
  %666 = vmatmul.bf16.gmra.mxu0 %v512
  %v667 = vpop.f32.mrf.mxu0
  %v668 = vadd.f32 %v472, %v667
  %v669 = vpop.f32.mrf.mxu0
  %v670 = vadd.f32 %v472, %v669
  %671 = vmatmul.bf16.gmra.mxu0 %v529
  %v672 = vpop.f32.mrf.mxu0
  %v673 = vadd.f32 %v472, %v672
  %v674 = vpop.f32.mrf.mxu0
  %v675 = vadd.f32 %v472, %v674
  %676 = vdwg.mxu0
  %677 = vmatpush.bf16.msra.mxu0 %v627
  %678 = vmatpush.bf16.msra.mxu0 %v626
  %679 = vmatpush.bf16.msra.mxu0 %v625
  %680 = vmatpush.bf16.msra.mxu0 %v624
  %681 = vmatpush.bf16.msra.mxu0 %v623
  %682 = vmatpush.bf16.msra.mxu0 %v622
  %683 = vmatpush.bf16.msra.mxu0 %v621
  %684 = vmatpush.bf16.msra.mxu0 %v620
  %685 = vmatmul.bf16.gmra.mxu0 %v513
  %v686 = vpop.f32.mrf.mxu0
  %v687 = vadd.f32 %v668, %v686
  %v688 = vpop.f32.mrf.mxu0
  %v689 = vadd.f32 %v670, %v688
  %690 = vmatmul.bf16.gmra.mxu0 %v530
  %v691 = vpop.f32.mrf.mxu0
  %v692 = vadd.f32 %v673, %v691
  %v693 = vpop.f32.mrf.mxu0
  %v694 = vadd.f32 %v675, %v693
  %695 = vdwg.mxu0
  %696 = vmatpush.bf16.msra.mxu0 0
  %697 = vmatpush.bf16.msra.mxu0 0
  %698 = vmatpush.bf16.msra.mxu0 0
  %699 = vmatpush.bf16.msra.mxu0 0
  %700 = vmatpush.bf16.msra.mxu0 0
  %701 = vmatpush.bf16.msra.mxu0 %v656
  %702 = vmatpush.bf16.msra.mxu0 %v629
  %703 = vmatpush.bf16.msra.mxu0 %v628
  %704 = vmatmul.bf16.gmra.mxu0 %v650
  %v705 = vpop.f32.mrf.mxu0
  %v706 = vadd.f32 %v687, %v705
  %v707 = vpop.f32.mrf.mxu0
  %v708 = vadd.f32 %v689, %v707
  %709 = vmatmul.bf16.gmra.mxu0 %v652
  %v710 = vpop.f32.mrf.mxu0
  %v711 = vadd.f32 %v692, %v710
  %v712 = vpop.f32.mrf.mxu0
  %v713 = vadd.f32 %v694, %v712
  %714 = vdwg.mxu0
  %v719 = vrot.slane %v706, 1
  %v720 = vrot.slane %v706, 2
  %v721 = vrot.slane %v706, 3
  %v722 = vrot.slane %v706, 4
  %v723 = vrot.slane %v706, 5
  %v724 = vrot.slane %v706, 6
  %v725 = vrot.slane %v706, 7
  %v726 = vrot.slane %v708, 1
  %v727 = vrot.slane %v708, 2
  %v728 = vrot.slane %v708, 3
  %v729 = vrot.slane %v708, 4
  %v730 = vrot.slane %v708, 5
  %v731 = vrot.slane %v708, 6
  %v732 = vrot.slane %v708, 7
  %v733 = vrot.slane %v711, 1
  %v734 = vrot.slane %v711, 2
  %v735 = vrot.slane %v711, 3
  %v736 = vrot.slane %v711, 4
  %v737 = vrot.slane %v711, 5
  %v738 = vrot.slane %v711, 6
  %v739 = vrot.slane %v711, 7
  %v740 = vrot.slane %v713, 1
  %v741 = vrot.slane %v713, 2
  %v742 = vrot.slane %v713, 3
  %v743 = vrot.slane %v713, 4
  %v744 = vrot.slane %v713, 5
  %745 = vst [vmem:[#allocation1] ss:$9 sm:$0xff] %v706
  %s746 = scalar_lea.vmem [#allocation1], 1
  %747 = vst [vmem:[%s746] ss:$9 sm:$0xff] %v719
  %s748 = scalar_lea.vmem [#allocation1], 2
  %749 = vst [vmem:[%s748] ss:$9 sm:$0xff] %v720
  %s750 = scalar_lea.vmem [#allocation1], 3
  %751 = vst [vmem:[%s750] ss:$9 sm:$0xff] %v721
  %s752 = scalar_lea.vmem [#allocation1], 4
  %753 = vst [vmem:[%s752] ss:$9 sm:$0xff] %v722
  %s754 = scalar_lea.vmem [#allocation1], 5
  %755 = vst [vmem:[%s754] ss:$9 sm:$0xff] %v723
  %s756 = scalar_lea.vmem [#allocation1], 6
  %757 = vst [vmem:[%s756] ss:$9 sm:$0xff] %v724
  %s758 = scalar_lea.vmem [#allocation1], 7
  %759 = vst [vmem:[%s758] ss:$9 sm:$0xff] %v725
  %v760 = vld [vmem:[#allocation1] sm:$0xff]
  %761 = vst [vmem:[#allocation1] ss:$9 sm:$0xff] %v708
  %762 = vst [vmem:[%s746] ss:$9 sm:$0xff] %v726
  %763 = vst [vmem:[%s748] ss:$9 sm:$0xff] %v727
  %764 = vst [vmem:[%s750] ss:$9 sm:$0xff] %v728
  %765 = vst [vmem:[%s752] ss:$9 sm:$0xff] %v729
  %766 = vst [vmem:[%s754] ss:$9 sm:$0xff] %v730
  %767 = vst [vmem:[%s756] ss:$9 sm:$0xff] %v731
  %v768 = vld [vmem:[#allocation1] sm:$0xff]
  %769 = vst [vmem:[#allocation1] ss:$9 sm:$0xff] %v732
  %770 = vst [vmem:[%s746] ss:$9 sm:$0xff] %v711
  %771 = vst [vmem:[%s748] ss:$9 sm:$0xff] %v733
  %772 = vst [vmem:[%s750] ss:$9 sm:$0xff] %v734
  %773 = vst [vmem:[%s752] ss:$9 sm:$0xff] %v735
  %774 = vst [vmem:[%s754] ss:$9 sm:$0xff] %v736
  %775 = vst [vmem:[%s756] ss:$9 sm:$0xff] %v737
  %776 = vst [vmem:[%s758] ss:$9 sm:$0xff] %v738
  %v777 = vld [vmem:[#allocation1] sm:$0xff]
  %778 = vst [vmem:[#allocation1] ss:$9 sm:$0xff] %v739
  %779 = vst [vmem:[%s746] ss:$9 sm:$0xff] %v713
  %780 = vst [vmem:[%s748] ss:$9 sm:$0xff] %v740
  %781 = vst [vmem:[%s750] ss:$9 sm:$0xff] %v741
  %782 = vst [vmem:[%s752] ss:$9 sm:$0xff] %v742
  %783 = vst [vmem:[%s754] ss:$9 sm:$0xff] %v743
  %784 = vst [vmem:[%s756] ss:$9 sm:$0xff] %v744
  %v785 = vld [vmem:[#allocation1] sm:$0xff]
  %v790 = vpack.c.bf16 %v760, %v760
  %v791 = vpack.c.bf16 %v768, %v768
  %v792 = vpack.c.bf16 %v777, %v777
  %v793 = vpack.c.bf16 %v785, %v785
  %794 = vst.msk [vmem:[%s8] sm:$0xf] %vm243, %v790
  %vm795 = vcmask 257024
  %vm796 = vsmask.f32 3328
  %vm797 = vmand %vm795, %vm796
  %v798 = vld [vmem:[%s8 + $0x4] sm:$0xf]
  %v799 = vsel %vm797, %v791, %v798
  %800 = vst [vmem:[%s8 + $0x4] sm:$0xf] %v799
  %801 = vst.msk [vmem:[%s8 + $0x8] sm:$0xf] %vm243, %v792
  %v802 = vld [vmem:[%s8 + $0xc] sm:$0xf]
  %v803 = vsel %vm797, %v793, %v802
  %804 = vst [vmem:[%s8 + $0xc] sm:$0xf] %v803
  // Predicated region
  $region30: #{tpu_custom_call.1} parent=0 // pred_check
    _
  $region31: #{tpu_custom_call.1} parent=0 // pred_check_branch
    %806 = sbr.rel (0) target = $region33
  $region32: #{tpu_custom_call.1} parent=0 // pred_region
    _
  $region33: #{tpu_custom_call.1} parent=0 // pred_fallthru
    _
  // Predicated region
  $region34: #{tpu_custom_call.1} parent=0 // pred_check
    _
  $region35: #{tpu_custom_call.1} parent=0 // pred_check_branch
    %808 = sbr.rel (0) target = $region37
  $region36: #{tpu_custom_call.1} parent=0 // pred_region
    _
  $region37: #{tpu_custom_call.1} parent=0 // pred_fallthru
    _
  // Predicated region
  $region38: #{tpu_custom_call.1} parent=0 // pred_check
    _
  $region39: #{tpu_custom_call.1} parent=0 // pred_check_branch
    %810 = sbr.rel (0) target = $region41
  $region40: #{tpu_custom_call.1} parent=0 // pred_region
    _
  $region41: #{tpu_custom_call.1} parent=0 // pred_fallthru
    _
  // Predicated region
  $region42: #{tpu_custom_call.1} parent=0 // pred_check
    _
  $region43: #{tpu_custom_call.1} parent=0 // pred_check_branch
    %812 = sbr.rel (0) target = $region45
  $region44: #{tpu_custom_call.1} parent=0 // pred_region
    _
  $region45: #{tpu_custom_call.1} parent=0 // pred_fallthru
    _

</llo_original>
